<compile_context>
chip_gen: v5e
topology: v5e:2x2
jax: 0.10.0
libtpu: 0.0.40
codegen_flags: <defaults>
</compile_context>

<pallas_src>
import functools

import jax
import jax.numpy as jnp
from jax.experimental import pallas as pl
from jax.experimental.pallas import tpu as pltpu


def _round_up(x: int, m: int) -> int:
    return ((x + m - 1) // m) * m


def _head_kernel(x_ref, w1_ref, b1_ref, w2_ref, b2_ref, o_ref):
    # x tile: [TB, H] f32 -> bf16 for the MXU; accumulate in f32.
    x = x_ref[...].astype(jnp.bfloat16)

    # dense: x @ W1 + b1, then tanh (dropout == identity at inference).
    h = jnp.dot(x, w1_ref[...], preferred_element_type=jnp.float32)
    h = h + b1_ref[...]          # [1, H] row broadcast
    h = jnp.tanh(h)              # EUP — rides in an otherwise-idle slot

    # out_proj: h @ W2 + b2 (W2/b2 are zero-padded on the lane dim to O_pad).
    y = jnp.dot(h.astype(jnp.bfloat16), w2_ref[...], preferred_element_type=jnp.float32)
    y = y + b2_ref[...]          # [1, O_pad] row broadcast
    o_ref[...] = y.astype(o_ref.dtype)


@functools.partial(jax.jit, static_argnames=("tb",))
def esm_classification_head(x, w1_t, b1, w2_t, b2, *, tb=None):
    """ESM classification head forward.

    x:    [B, H]  float32 activations
    w1_t: [H, H]  dense weight, pre-transposed to [in, out]
    b1:   [H]     dense bias
    w2_t: [H, O]  out_proj weight, pre-transposed to [in, out]
    b2:   [O]     out_proj bias
    returns [B, O] float32
    """
    B, H = x.shape
    O = w2_t.shape[1]

    # ---- Tiling / padding choices -------------------------------------------------
    if tb is None:
        tb = max(8, min(256, _round_up(B, 8)))     # sublane-multiple batch tile
    B_pad = _round_up(B, tb)
    O_pad = _round_up(O, 128)                       # lane-dense output stores

    # ---- Host-side layout prep (pad + cast weights to bf16) ----------------------
    x_p = jnp.pad(x, ((0, B_pad - B), (0, 0))) if B_pad != B else x
    w1_bf = w1_t.astype(jnp.bfloat16)
    w2_bf = jnp.pad(w2_t, ((0, 0), (0, O_pad - O))).astype(jnp.bfloat16)
    b1_r = b1.reshape(1, H).astype(jnp.float32)
    b2_r = jnp.pad(b2.reshape(1, O), ((0, 0), (0, O_pad - O))).astype(jnp.float32)

    grid = (B_pad // tb,)

    # ---- VMEM budget: resident weights + double-buffered x/out tiles + headroom ---
    resident_bytes = H * H * 2 + H * O_pad * 2 + H * 4 + O_pad * 4
    tile_bytes = 2 * (tb * H * 4 + tb * O_pad * 4)   # double-buffered in/out tiles
    vmem_limit = int(min(64 << 20, max(16 << 20, 2 * (resident_bytes + tile_bytes) + (4 << 20))))

    cost = pl.CostEstimate(
        flops=2 * B_pad * H * H + 2 * B_pad * H * O_pad,
        transcendentals=B_pad * H,
        bytes_accessed=B_pad * H * 4 + resident_bytes + B_pad * O_pad * 4,
    )

    out_p = pl.pallas_call(
        _head_kernel,
        out_shape=jax.ShapeDtypeStruct((B_pad, O_pad), jnp.float32),
        grid=grid,
        in_specs=[
            pl.BlockSpec((tb, H), lambda i: (i, 0)),        # x: batch-tiled
            pl.BlockSpec((H, H), lambda i: (0, 0)),         # W1: resident
            pl.BlockSpec((1, H), lambda i: (0, 0)),         # b1: resident
            pl.BlockSpec((H, O_pad), lambda i: (0, 0)),     # W2: resident
            pl.BlockSpec((1, O_pad), lambda i: (0, 0)),     # b2: resident
        ],
        out_specs=pl.BlockSpec((tb, O_pad), lambda i: (i, 0)),
        compiler_params=pltpu.CompilerParams(
            dimension_semantics=("parallel",),
            vmem_limit_bytes=vmem_limit,
        ),
        cost_estimate=cost,
    )(x_p, w1_bf, b1_r, w2_bf, b2_r)

    return out_p[:B, :O]


def reference(x, w1_t, b1, w2_t, b2):
    h = jnp.tanh(x @ w1_t + b1.reshape(1, -1))
    return h @ w2_t + b2.reshape(1, -1)


if __name__ == "__main__":
    # Small but lane/sublane-friendly demo shapes (real ESM: H = 640/1280/2560).
    B, H, OUT = 16, 128, 8

    key = jax.random.PRNGKey(0)
    kx, kw1, kb1, kw2, kb2 = jax.random.split(key, 5)

    # nn.Linear(H, H) / nn.Linear(H, OUT) weights, stored pre-transposed as [in, out].
    x = jax.random.normal(kx, (B, H), dtype=jnp.float32)
    w1_t = jax.random.normal(kw1, (H, H), dtype=jnp.float32) * (1.0 / jnp.sqrt(H))
    b1 = jax.random.normal(kb1, (H,), dtype=jnp.float32) * 0.01
    w2_t = jax.random.normal(kw2, (H, OUT), dtype=jnp.float32) * (1.0 / jnp.sqrt(H))
    b2 = jax.random.normal(kb2, (OUT,), dtype=jnp.float32) * 0.01

    out = esm_classification_head(x, w1_t, b1, w2_t, b2)
    out = jax.block_until_ready(out)

    ref = reference(x, w1_t, b1, w2_t, b2)
    assert out.shape == (B, OUT), out.shape
    # bf16 MXU inputs with f32 accumulation -> compare against f32 ref with bf16 tolerance.
    assert jnp.allclose(out, ref, atol=3e-2, rtol=3e-2), float(jnp.max(jnp.abs(out - ref)))

    print("KERNEL_OK")
</pallas_src>

<mosaic_0001>
module attributes {stable_mosaic.version = 11 : i64} {
  func.func @_head_kernel(%arg0: i32, %arg1: memref<16x128xf32, #tpu.memory_space<vmem>>, %arg2: memref<128x128xbf16, #tpu.memory_space<vmem>>, %arg3: memref<1x128xf32, #tpu.memory_space<vmem>>, %arg4: memref<128x128xbf16, #tpu.memory_space<vmem>>, %arg5: memref<1x128xf32, #tpu.memory_space<vmem>>, %arg6: memref<16x128xf32, #tpu.memory_space<vmem>>) attributes {dimension_semantics = [#tpu.dimension_semantics<parallel>], iteration_bounds = array<i64: 1>, scalar_prefetch = 0 : i64, scratch_operands = 0 : i64, tpu.core_type = #tpu.core_type<tc>, window_params = [{transform_indices = @transform_0, window_bounds = array<i64: 16, 128>}, {pipeline_mode = #tpu.pipeline_mode<synchronous>, transform_indices = @transform_1, window_bounds = array<i64: 128, 128>}, {pipeline_mode = #tpu.pipeline_mode<synchronous>, transform_indices = @transform_2, window_bounds = array<i64: 1, 128>}, {pipeline_mode = #tpu.pipeline_mode<synchronous>, transform_indices = @transform_3, window_bounds = array<i64: 128, 128>}, {pipeline_mode = #tpu.pipeline_mode<synchronous>, transform_indices = @transform_4, window_bounds = array<i64: 1, 128>}, {transform_indices = @transform_5, window_bounds = array<i64: 16, 128>}]} {
    %c0 = arith.constant 0 : index
    %c0_0 = arith.constant 0 : index
    %0 = vector.load %arg1[%c0, %c0_0] : memref<16x128xf32, #tpu.memory_space<vmem>>, vector<16x128xf32>
    %1 = arith.truncf %0 : vector<16x128xf32> to vector<16x128xbf16>
    %c0_1 = arith.constant 0 : index
    %c0_2 = arith.constant 0 : index
    %2 = vector.load %arg2[%c0_1, %c0_2] : memref<128x128xbf16, #tpu.memory_space<vmem>>, vector<128x128xbf16>
    %cst = arith.constant dense<0.000000e+00> : vector<16x128xf32>
    %3 = tpu.matmul %1, %2, %cst {dimension_numbers = #tpu.dot_dimension_numbers<[1], [0], [0], [1], [0, 0, 1, 1], [], []>} : vector<16x128xbf16>, vector<128x128xbf16>, vector<16x128xf32> -> vector<16x128xf32>
    %c0_3 = arith.constant 0 : index
    %c0_4 = arith.constant 0 : index
    %4 = vector.load %arg3[%c0_3, %c0_4] : memref<1x128xf32, #tpu.memory_space<vmem>>, vector<1x128xf32>
    %5 = vector.broadcast %4 : vector<1x128xf32> to vector<16x128xf32>
    %6 = arith.addf %3, %5 : vector<16x128xf32>
    %7 = math.tanh %6 : vector<16x128xf32>
    %8 = arith.truncf %7 : vector<16x128xf32> to vector<16x128xbf16>
    %c0_5 = arith.constant 0 : index
    %c0_6 = arith.constant 0 : index
    %9 = vector.load %arg4[%c0_5, %c0_6] : memref<128x128xbf16, #tpu.memory_space<vmem>>, vector<128x128xbf16>
    %cst_7 = arith.constant dense<0.000000e+00> : vector<16x128xf32>
    %10 = tpu.matmul %8, %9, %cst_7 {dimension_numbers = #tpu.dot_dimension_numbers<[1], [0], [0], [1], [0, 0, 1, 1], [], []>} : vector<16x128xbf16>, vector<128x128xbf16>, vector<16x128xf32> -> vector<16x128xf32>
    %c0_8 = arith.constant 0 : index
    %c0_9 = arith.constant 0 : index
    %11 = vector.load %arg5[%c0_8, %c0_9] : memref<1x128xf32, #tpu.memory_space<vmem>>, vector<1x128xf32>
    %12 = vector.broadcast %11 : vector<1x128xf32> to vector<16x128xf32>
    %13 = arith.addf %10, %12 : vector<16x128xf32>
    %c0_10 = arith.constant 0 : index
    %c0_11 = arith.constant 0 : index
    %14 = vector.load %arg6[%c0_10, %c0_11] : memref<16x128xf32, #tpu.memory_space<vmem>>, vector<16x128xf32>
    tpu.vector_store %arg6[%c0_10, %c0_11], %13 {strides = array<i32>} : memref<16x128xf32, #tpu.memory_space<vmem>>, vector<16x128xf32>,
    return
  }
  func.func @transform_0(%arg0: i32) -> (i32, i32) {
    %c0_i32 = arith.constant 0 : i32
    %c0_i32_0 = arith.constant 0 : i32
    return %arg0, %c0_i32 : i32, i32
  }
  func.func @transform_1(%arg0: i32) -> (i32, i32) {
    %c0_i32 = arith.constant 0 : i32
    %c0_i32_0 = arith.constant 0 : i32
    %c0_i32_1 = arith.constant 0 : i32
    return %c0_i32, %c0_i32_0 : i32, i32
  }
  func.func @transform_2(%arg0: i32) -> (i32, i32) {
    %c0_i32 = arith.constant 0 : i32
    %c0_i32_0 = arith.constant 0 : i32
    %c0_i32_1 = arith.constant 0 : i32
    return %c0_i32, %c0_i32_0 : i32, i32
  }
  func.func @transform_3(%arg0: i32) -> (i32, i32) {
    %c0_i32 = arith.constant 0 : i32
    %c0_i32_0 = arith.constant 0 : i32
    %c0_i32_1 = arith.constant 0 : i32
    return %c0_i32, %c0_i32_0 : i32, i32
  }
  func.func @transform_4(%arg0: i32) -> (i32, i32) {
    %c0_i32 = arith.constant 0 : i32
    %c0_i32_0 = arith.constant 0 : i32
    %c0_i32_1 = arith.constant 0 : i32
    return %c0_i32, %c0_i32_0 : i32, i32
  }
  func.func @transform_5(%arg0: i32) -> (i32, i32) {
    %c0_i32 = arith.constant 0 : i32
    %c0_i32_0 = arith.constant 0 : i32
    return %arg0, %c0_i32 : i32, i32
  }
}

</mosaic_0001>

<llo_original>
// kernel: esm_classification_head.1
$region0: #{esm_classification_head.1}
  #allocation0 [shape = 'u32[]', space=smem, size = 0x4, offset = 0x4, fixed_abs, tag = 'smem constant byte address 0x4 - core index']
  #allocation1 [shape = 'u32[72,128]{1,0:T(1,128)}', space=vmem, size = 0x9000, scoped, tag = 'internal scratch']
  %s0 = inlined_call_operand.vmem [shape: f32[16,128], index: 0, kind: input, shape index: {}]
  %s1 = inlined_call_operand.vmem [shape: bf16[128,128], index: 1, kind: input, shape index: {}]
  %s2 = inlined_call_operand.vmem [shape: f32[1,128], index: 2, kind: input, shape index: {}]
  %s3 = inlined_call_operand.vmem [shape: bf16[128,128], index: 3, kind: input, shape index: {}]
  %s4 = inlined_call_operand.vmem [shape: f32[1,128], index: 4, kind: input, shape index: {}]
  %s5 = inlined_call_operand.vmem [shape: f32[16,128], index: 5, kind: output, shape index: {}]
  %s6 = sld [smem:[#allocation0]]
  $region30: #{esm_classification_head.1} parent=0
    _
  %s8 = ssub.s32 1, %s6
  %s9 = scalar_select 0, %s8, %s6
  // Predicated region
  $region2: #{esm_classification_head.1} parent=0 // pred_check
    _
  $region3: #{esm_classification_head.1} parent=0 // pred_check_branch
    %11 = sbr.rel (0) target = $region5
  $region4: #{esm_classification_head.1} parent=0 // pred_region
    _
  $region5: #{esm_classification_head.1} parent=0 // pred_fallthru
    _
  // Predicated region
  $region6: #{esm_classification_head.1} parent=0 // pred_check
    _
  $region7: #{esm_classification_head.1} parent=0 // pred_check_branch
    %13 = sbr.rel (0) target = $region9
  $region8: #{esm_classification_head.1} parent=0 // pred_region
    _
  $region9: #{esm_classification_head.1} parent=0 // pred_fallthru
    _
  // Predicated region
  $region10: #{esm_classification_head.1} parent=0 // pred_check
    _
  $region11: #{esm_classification_head.1} parent=0 // pred_check_branch
    %15 = sbr.rel (0) target = $region13
  $region12: #{esm_classification_head.1} parent=0 // pred_region
    _
  $region13: #{esm_classification_head.1} parent=0 // pred_fallthru
    _
  // Predicated region
  $region14: #{esm_classification_head.1} parent=0 // pred_check
    _
  $region15: #{esm_classification_head.1} parent=0 // pred_check_branch
    %17 = sbr.rel (0) target = $region17
  $region16: #{esm_classification_head.1} parent=0 // pred_region
    _
  $region17: #{esm_classification_head.1} parent=0 // pred_fallthru
    _
  // Predicated region
  $region18: #{esm_classification_head.1} parent=0 // pred_check
    _
  $region19: #{esm_classification_head.1} parent=0 // pred_check_branch
    %19 = sbr.rel (0) target = $region21
  $region20: #{esm_classification_head.1} parent=0 // pred_region
    _
  $region21: #{esm_classification_head.1} parent=0 // pred_fallthru
    _
  %v20 = vld [vmem:[%s0] sm:$0xff]
  %v21 = vld [vmem:[%s0 + $0x8] sm:$0xff]
  %v22 = vpack.c.bf16 %v21, %v20
  %v23 = vld [vmem:[%s1] sm:$0xf]
  %v24 = vld [vmem:[%s1 + $0x4] sm:$0xf]
  %v25 = vld [vmem:[%s1 + $0x8] sm:$0xf]
  %v26 = vld [vmem:[%s1 + $0xc] sm:$0xf]
  %v27 = vld [vmem:[%s1 + $0x10] sm:$0xf]
  %v28 = vld [vmem:[%s1 + $0x14] sm:$0xf]
  %v29 = vld [vmem:[%s1 + $0x18] sm:$0xf]
  %v30 = vld [vmem:[%s1 + $0x1c] sm:$0xf]
  %v31 = vld [vmem:[%s1 + $0x20] sm:$0xf]
  %v32 = vld [vmem:[%s1 + $0x24] sm:$0xf]
  %v33 = vld [vmem:[%s1 + $0x28] sm:$0xf]
  %v34 = vld [vmem:[%s1 + $0x2c] sm:$0xf]
  %v35 = vld [vmem:[%s1 + $0x30] sm:$0xf]
  %v36 = vld [vmem:[%s1 + $0x34] sm:$0xf]
  %v37 = vld [vmem:[%s1 + $0x38] sm:$0xf]
  %v38 = vld [vmem:[%s1 + $0x3c] sm:$0xf]
  %v39 = vld [vmem:[%s2] sm:$0x1]
  %v41 = vperm.slane %v39, 0
  %v59 = vunpack.c.l.b16 %v23
  %v60 = vunpack.c.l.b16 %v24
  %v61 = vunpack.c.l.b16 %v25
  %v62 = vunpack.c.l.b16 %v26
  %v63 = vunpack.c.l.b16 %v27
  %v64 = vunpack.c.l.b16 %v28
  %v65 = vunpack.c.l.b16 %v29
  %v66 = vunpack.c.l.b16 %v30
  %v67 = vunpack.c.l.b16 %v31
  %v68 = vunpack.c.l.b16 %v32
  %v69 = vunpack.c.l.b16 %v33
  %v70 = vunpack.c.l.b16 %v34
  %v71 = vunpack.c.l.b16 %v35
  %v72 = vunpack.c.l.b16 %v36
  %v73 = vunpack.c.l.b16 %v37
  %v74 = vunpack.c.l.b16 %v38
  %v75 = vpack.c.b16 %v60, %v59
  %v76 = vpack.c.b16 %v62, %v61
  %v77 = vpack.c.b16 %v64, %v63
  %v78 = vpack.c.b16 %v66, %v65
  %v79 = vpack.c.b16 %v68, %v67
  %v80 = vpack.c.b16 %v70, %v69
  %v81 = vpack.c.b16 %v72, %v71
  %v82 = vpack.c.b16 %v74, %v73
  %91 = vmatpush.bf16.msra.mxu0 %v82
  %92 = vmatpush.bf16.msra.mxu0 %v81
  %93 = vmatpush.bf16.msra.mxu0 %v80
  %94 = vmatpush.bf16.msra.mxu0 %v79
  %95 = vmatpush.bf16.msra.mxu0 %v78
  %96 = vmatpush.bf16.msra.mxu0 %v77
  %97 = vmatpush.bf16.msra.mxu0 %v76
  %98 = vmatpush.bf16.msra.mxu0 %v75
  %99 = vmatmul.bf16.gmra.mxu0 %v22
  %v100 = vpop.f32.mrf.mxu0
  %v101 = vadd.f32 %v41, %v100
  %v102 = vpop.f32.mrf.mxu0
  %v103 = vadd.f32 %v41, %v102
  %104 = vdwg.mxu0
  %v105 = vtanh.pop %v101
  %v106 = vtanh.pop %v103
  %v107 = vpack.c.bf16 %v106, %v105
  %v108 = vld [vmem:[%s3] sm:$0xf]
  %v109 = vld [vmem:[%s3 + $0x4] sm:$0xf]
  %v110 = vld [vmem:[%s3 + $0x8] sm:$0xf]
  %v111 = vld [vmem:[%s3 + $0xc] sm:$0xf]
  %v112 = vld [vmem:[%s3 + $0x10] sm:$0xf]
  %v113 = vld [vmem:[%s3 + $0x14] sm:$0xf]
  %v114 = vld [vmem:[%s3 + $0x18] sm:$0xf]
  %v115 = vld [vmem:[%s3 + $0x1c] sm:$0xf]
  %v116 = vld [vmem:[%s3 + $0x20] sm:$0xf]
  %v117 = vld [vmem:[%s3 + $0x24] sm:$0xf]
  %v118 = vld [vmem:[%s3 + $0x28] sm:$0xf]
  %v119 = vld [vmem:[%s3 + $0x2c] sm:$0xf]
  %v120 = vld [vmem:[%s3 + $0x30] sm:$0xf]
  %v121 = vld [vmem:[%s3 + $0x34] sm:$0xf]
  %v122 = vld [vmem:[%s3 + $0x38] sm:$0xf]
  %v123 = vld [vmem:[%s3 + $0x3c] sm:$0xf]
  %v124 = vld [vmem:[%s4] sm:$0x1]
  %v126 = vperm.slane %v124, 0
  %v144 = vunpack.c.l.b16 %v108
  %v145 = vunpack.c.l.b16 %v109
  %v146 = vunpack.c.l.b16 %v110
  %v147 = vunpack.c.l.b16 %v111
  %v148 = vunpack.c.l.b16 %v112
  %v149 = vunpack.c.l.b16 %v113
  %v150 = vunpack.c.l.b16 %v114
  %v151 = vunpack.c.l.b16 %v115
  %v152 = vunpack.c.l.b16 %v116
  %v153 = vunpack.c.l.b16 %v117
  %v154 = vunpack.c.l.b16 %v118
  %v155 = vunpack.c.l.b16 %v119
  %v156 = vunpack.c.l.b16 %v120
  %v157 = vunpack.c.l.b16 %v121
  %v158 = vunpack.c.l.b16 %v122
  %v159 = vunpack.c.l.b16 %v123
  %v160 = vpack.c.b16 %v145, %v144
  %v161 = vpack.c.b16 %v147, %v146
  %v162 = vpack.c.b16 %v149, %v148
  %v163 = vpack.c.b16 %v151, %v150
  %v164 = vpack.c.b16 %v153, %v152
  %v165 = vpack.c.b16 %v155, %v154
  %v166 = vpack.c.b16 %v157, %v156
  %v167 = vpack.c.b16 %v159, %v158
  %176 = vmatpush.bf16.msra.mxu0 %v167
  %177 = vmatpush.bf16.msra.mxu0 %v166
  %178 = vmatpush.bf16.msra.mxu0 %v165
  %179 = vmatpush.bf16.msra.mxu0 %v164
  %180 = vmatpush.bf16.msra.mxu0 %v163
  %181 = vmatpush.bf16.msra.mxu0 %v162
  %182 = vmatpush.bf16.msra.mxu0 %v161
  %183 = vmatpush.bf16.msra.mxu0 %v160
  %184 = vmatmul.bf16.gmra.mxu0 %v107
  %v185 = vpop.f32.mrf.mxu0
  %v186 = vadd.f32 %v126, %v185
  %v187 = vpop.f32.mrf.mxu0
  %v188 = vadd.f32 %v126, %v187
  %189 = vdwg.mxu0
  %190 = vst [vmem:[%s5] sm:$0xff] %v186
  %191 = vst [vmem:[%s5 + $0x8] sm:$0xff] %v188
  // Predicated region
  $region22: #{esm_classification_head.1} parent=0 // pred_check
    _
  $region23: #{esm_classification_head.1} parent=0 // pred_check_branch
    %193 = sbr.rel (0) target = $region25
  $region24: #{esm_classification_head.1} parent=0 // pred_region
    _
  $region25: #{esm_classification_head.1} parent=0 // pred_fallthru
    _
  // Predicated region
  $region26: #{esm_classification_head.1} parent=0 // pred_check
    _
  $region27: #{esm_classification_head.1} parent=0 // pred_check_branch
    %195 = sbr.rel (0) target = $region29
  $region28: #{esm_classification_head.1} parent=0 // pred_region
    _
  $region29: #{esm_classification_head.1} parent=0 // pred_fallthru
    _

</llo_original>
